<compile_context>
chip_gen: v5e
topology: v5e:2x2
jax: 0.10.0
libtpu: 0.0.40
codegen_flags: <defaults>
</compile_context>

<pallas_src>
import functools

import jax
import jax.numpy as jnp
from jax.experimental import pallas as pl
from jax.experimental.pallas import tpu as pltpu


def _round_up(n, m):
    return ((n + m - 1) // m) * m


def lstm_seq_kernel(x_ref, h0_ref, c0_ref,
                    w_x_ref, w_h_ref, b_g_ref, w_out_ref, b_out_ref,
                    logp_ref, h_out_ref, c_out_ref,
                    h_sc, c_sc, *, gates_bf16):
    """Fused LSTM over time: grid = (batch_tiles, T).

    Per grid step this runs one cell update + output projection + log-softmax
    for one (batch_tile, timestep).  h/c live in VMEM scratch across the time
    axis; weights are resident (constant index_maps).  MXU dots are bf16 with
    f32 accumulation; elementwise math is f32 (optionally bf16 gates on
    v6e/v7x via gates_bf16).
    """
    t = pl.program_id(1)
    Hp = c_sc.shape[1]                       # padded hidden (multiple of 128)

    @pl.when(t == 0)
    def _():                                 # load carried state for this batch tile
        h_sc[...] = h0_ref[...]
        c_sc[...] = c0_ref[...]

    x = x_ref[...].astype(jnp.bfloat16)      # cast only the MXU operands
    h = h_sc[...].astype(jnp.bfloat16)

    # Split-dot replaces concat([x, h]) @ W: no combined array is materialized.
    z = (jnp.dot(x, w_x_ref[...], preferred_element_type=jnp.float32)
         + jnp.dot(h, w_h_ref[...], preferred_element_type=jnp.float32)
         + b_g_ref[...])                     # (bt, 4*Hp), f32

    # Gate order along the 4*Hp axis: [i, f, o, g]; each slice is lane-aligned.
    if gates_bf16:                           # v6e/v7x only (bf16 EUP/VPU); off on v5e
        sig = lambda v: jax.nn.sigmoid(v.astype(jnp.bfloat16)).astype(jnp.float32)
        tnh = lambda v: jnp.tanh(v.astype(jnp.bfloat16)).astype(jnp.float32)
    else:
        sig, tnh = jax.nn.sigmoid, jnp.tanh
    i = sig(z[:, 0 * Hp:1 * Hp])
    f = sig(z[:, 1 * Hp:2 * Hp])
    o = sig(z[:, 2 * Hp:3 * Hp])
    g = tnh(z[:, 3 * Hp:4 * Hp])

    c_next = f * c_sc[...] + i * g           # f32 state update
    h_next = o * jnp.tanh(c_next)
    c_sc[...] = c_next
    h_sc[...] = h_next

    # Output projection: (bt, Hp) @ (Hp, Op) on the MXU, f32 accumulate.
    # b_out already holds -1e30 in the padded class lanes (mask baked in).
    logits = jnp.dot(h_next.astype(jnp.bfloat16), w_out_ref[...],
                     preferred_element_type=jnp.float32) + b_out_ref[...]

    # LogSoftmax over dim=1 (f32 throughout).
    m = jnp.max(logits, axis=-1, keepdims=True)
    lse = jnp.log(jnp.sum(jnp.exp(logits - m), axis=-1, keepdims=True)) + m
    logp_ref[...] = logits - lse

    @pl.when(t == pl.num_programs(1) - 1)
    def _():                                 # write final carried state once
        h_out_ref[...] = h_next
        c_out_ref[...] = c_next


def make_lstm_forward(input_size, hidden_size, output_size, batch, seq_len=1,
                      *, gates_bf16=False):
    """Builds a jitted forward(x_seq, h, c, packed_params) for fixed sizes.

    x_seq: (T, batch, input_size).  Returns (logp_seq, (h_T, c_T)).
    The original module's forward is the T=1 case.
    """
    T = int(seq_len)
    In_p = _round_up(input_size, 128)        # contraction axis: clean bf16 tiles
    Hp = _round_up(hidden_size, 128)
    Op = _round_up(output_size, 128)
    Bp = _round_up(max(batch, 8), 8)
    if Bp > 128:                             # batch tiling for v7x TC sharding
        Bp = _round_up(Bp, 128)
        bt = 128
    else:
        bt = Bp

    kernel = functools.partial(lstm_seq_kernel, gates_bf16=gates_bf16)

    grid = (Bp // bt, T)

    in_specs = [
        # x: one (bt, In_p) tile per (batch_tile, timestep)
        pl.BlockSpec((pl.Squeezed(), bt, In_p), lambda b, t: (t, b, 0)),
        # initial h / c: per batch tile, constant over time
        pl.BlockSpec((bt, Hp), lambda b, t: (b, 0)),
        pl.BlockSpec((bt, Hp), lambda b, t: (b, 0)),
        # weights / biases: constant index_maps -> loaded once, stay resident
        pl.BlockSpec((In_p, 4 * Hp), lambda b, t: (0, 0)),
        pl.BlockSpec((Hp, 4 * Hp), lambda b, t: (0, 0)),
        pl.BlockSpec((1, 4 * Hp), lambda b, t: (0, 0)),
        pl.BlockSpec((Hp, Op), lambda b, t: (0, 0)),
        pl.BlockSpec((1, Op), lambda b, t: (0, 0)),
    ]
    out_specs = (
        pl.BlockSpec((pl.Squeezed(), bt, Op), lambda b, t: (t, b, 0)),   # logp per step
        pl.BlockSpec((bt, Hp), lambda b, t: (b, 0)),                     # h_T
        pl.BlockSpec((bt, Hp), lambda b, t: (b, 0)),                     # c_T
    )
    out_shapes = (
        jax.ShapeDtypeStruct((T, Bp, Op), jnp.float32),
        jax.ShapeDtypeStruct((Bp, Hp), jnp.float32),
        jax.ShapeDtypeStruct((Bp, Hp), jnp.float32),
    )
    scratch_shapes = [pltpu.VMEM((bt, Hp), jnp.float32),   # h carry
                      pltpu.VMEM((bt, Hp), jnp.float32)]   # c carry

    # Scoped-VMEM budget from actual resident buffers (x/logp tiles and state
    # blocks double-buffered, weights + scratch counted twice for safety).
    resident = 0
    resident += 2 * (bt * In_p * 4)                                   # x tile
    resident += 2 * (bt * Op * 4)                                     # logp tile
    resident += 2 * 4 * (bt * Hp * 4)                                 # h0/c0/h_out/c_out
    resident += 2 * ((In_p * 4 * Hp + Hp * 4 * Hp + Hp * Op) * 2)     # bf16 weights
    resident += 2 * ((4 * Hp + Op) * 4)                               # f32 biases
    resident += 2 * (bt * Hp * 4)                                     # scratch
    vmem_limit = int(max(resident + (1 << 20), 4 << 20))

    call = pl.pallas_call(
        kernel,
        grid=grid,
        in_specs=in_specs,
        out_specs=out_specs,
        out_shape=out_shapes,
        scratch_shapes=scratch_shapes,
        # h0 -> h_out, c0 -> c_out share buffers (padded lanes stay zero under
        # the recurrence, so the padded state can persist across calls).
        input_output_aliases={1: 1, 2: 2},
        compiler_params=pltpu.CompilerParams(
            dimension_semantics=("parallel", "arbitrary"),
            vmem_limit_bytes=vmem_limit),
    )

    @jax.jit
    def forward(x_seq, h, c, packed):
        w_x, w_h, b_g, w_out, b_out = packed
        xp = (jnp.zeros((T, Bp, In_p), jnp.float32)
              .at[:, :batch, :input_size].set(x_seq))
        hp = jnp.zeros((Bp, Hp), jnp.float32).at[:batch, :hidden_size].set(h)
        cp = jnp.zeros((Bp, Hp), jnp.float32).at[:batch, :hidden_size].set(c)
        logp_p, h_p, c_p = call(xp, hp, cp, w_x, w_h, b_g, w_out, b_out)
        return (logp_p[:, :batch, :output_size],
                (h_p[:batch, :hidden_size], c_p[:batch, :hidden_size]))

    return forward


def init_params(key, input_size, hidden_size, output_size):
    """PyTorch-Linear-like init; weights stored in (out_features, in_features)."""
    D = input_size + hidden_size
    ks = jax.random.split(key, 10)
    bd = 1.0 / float(D) ** 0.5
    bo = 1.0 / float(hidden_size) ** 0.5
    u = lambda k, shp, b: jax.random.uniform(k, shp, jnp.float32, -b, b)
    return {
        "W_i": u(ks[0], (hidden_size, D), bd), "b_i": u(ks[1], (hidden_size,), bd),
        "W_f": u(ks[2], (hidden_size, D), bd), "b_f": u(ks[3], (hidden_size,), bd),
        "W_o": u(ks[4], (hidden_size, D), bd), "b_o": u(ks[5], (hidden_size,), bd),
        "W_g": u(ks[6], (hidden_size, D), bd), "b_g": u(ks[7], (hidden_size,), bd),
        "W_out": u(ks[8], (output_size, hidden_size), bo),
        "b_out": u(ks[9], (output_size,), bo),
    }


def pack_params(params, input_size, hidden_size, output_size):
    """Repack PyTorch-layout params into the padded, pre-transposed kernel layout.

    Gate order along the 4*Hp axis is [i, f, o, g]; each gate block is padded to
    a 128-lane multiple.  x/h weight halves are split so the kernel needs no
    concat.  Weights are bf16 (MXU operands, accepted precision trade-off vs
    PyTorch f32 matmuls); biases stay f32.  The padded output-class lanes of
    b_out carry -1e30 (f32, not -inf) so the log-softmax mask is baked in.
    """
    In_p = _round_up(input_size, 128)
    Hp = _round_up(hidden_size, 128)
    Op = _round_up(output_size, 128)

    w_x = jnp.zeros((In_p, 4 * Hp), jnp.float32)
    w_h = jnp.zeros((Hp, 4 * Hp), jnp.float32)
    b_g = jnp.zeros((1, 4 * Hp), jnp.float32)
    for k, (wn, bn) in enumerate(
            (("W_i", "b_i"), ("W_f", "b_f"), ("W_o", "b_o"), ("W_g", "b_g"))):
        W = params[wn]                               # (H, input+H)  (out, in)
        w_x = w_x.at[:input_size, k * Hp:k * Hp + hidden_size].set(W[:, :input_size].T)
        w_h = w_h.at[:hidden_size, k * Hp:k * Hp + hidden_size].set(W[:, input_size:].T)
        b_g = b_g.at[0, k * Hp:k * Hp + hidden_size].set(params[bn])

    w_out = (jnp.zeros((Hp, Op), jnp.float32)
             .at[:hidden_size, :output_size].set(params["W_out"].T))
    b_out = jnp.full((1, Op), -1e30, jnp.float32)     # baked output-class mask
    b_out = b_out.at[0, :output_size].set(params["b_out"])

    return (w_x.astype(jnp.bfloat16), w_h.astype(jnp.bfloat16), b_g,
            w_out.astype(jnp.bfloat16), b_out)


def reference_forward(x, h, c, params, *, mxu_bf16):
    """Pure-JAX mirror of the PyTorch module (single step).

    mxu_bf16=True casts matmul operands to bf16 (f32 accumulation) to match the
    kernel's MXU precision; elementwise math is f32 in both cases.
    """
    def dot(a, w_t):
        if mxu_bf16:
            return jnp.dot(a.astype(jnp.bfloat16), w_t.astype(jnp.bfloat16),
                           preferred_element_type=jnp.float32)
        return jnp.dot(a, w_t, preferred_element_type=jnp.float32)

    combined = jnp.concatenate([x, h], axis=1)
    i = jax.nn.sigmoid(dot(combined, params["W_i"].T) + params["b_i"])
    f = jax.nn.sigmoid(dot(combined, params["W_f"].T) + params["b_f"])
    o = jax.nn.sigmoid(dot(combined, params["W_o"].T) + params["b_o"])
    g = jnp.tanh(dot(combined, params["W_g"].T) + params["b_g"])
    c_next = f * c + i * g
    h_next = o * jnp.tanh(c_next)
    logits = dot(h_next, params["W_out"].T) + params["b_out"]
    logp = jax.nn.log_softmax(logits, axis=1)
    return logp, (h_next, c_next)


def reference_seq(x_seq, h, c, params, *, mxu_bf16):
    logps = []
    for t in range(x_seq.shape[0]):
        lp, (h, c) = reference_forward(x_seq[t], h, c, params, mxu_bf16=mxu_bf16)
        logps.append(lp)
    return jnp.stack(logps), (h, c)


if __name__ == "__main__":
    input_size, hidden_size, output_size = 16, 32, 10
    batch, seq = 2, 8

    key = jax.random.PRNGKey(0)
    kx, kh, kc, kp = jax.random.split(key, 4)

    x_seq = jax.random.normal(kx, (seq, batch, input_size), jnp.float32)
    h0 = jax.random.normal(kh, (batch, hidden_size), jnp.float32)
    c0 = jax.random.normal(kc, (batch, hidden_size), jnp.float32)

    params = init_params(kp, input_size, hidden_size, output_size)
    packed = pack_params(params, input_size, hidden_size, output_size)

    # --- Single step: exactly the module's forward(input, (h, c)) semantics ---
    step_fwd = make_lstm_forward(input_size, hidden_size, output_size, batch, seq_len=1)
    logp1_seq, (h1, c1) = step_fwd(x_seq[:1], h0, c0, packed)
    jax.block_until_ready((logp1_seq, h1, c1))
    logp1 = logp1_seq[0]

    logp_r, (h_r, c_r) = reference_forward(x_seq[0], h0, c0, params, mxu_bf16=True)
    assert jnp.allclose(logp1, logp_r, atol=2e-3, rtol=2e-3)
    assert jnp.allclose(h1, h_r, atol=2e-3, rtol=2e-3)
    assert jnp.allclose(c1, c_r, atol=2e-3, rtol=2e-3)

    logp_f, (h_f, c_f) = reference_forward(x_seq[0], h0, c0, params, mxu_bf16=False)
    assert jnp.allclose(logp1, logp_f, atol=5e-2, rtol=5e-2)
    assert jnp.allclose(h1, h_f, atol=5e-2, rtol=5e-2)
    assert jnp.allclose(c1, c_f, atol=5e-2, rtol=5e-2)

    # --- Fused sequence: one kernel launch, weights resident, h/c carried in VMEM ---
    seq_fwd = make_lstm_forward(input_size, hidden_size, output_size, batch, seq_len=seq)
    logpT, (hT, cT) = seq_fwd(x_seq, h0, c0, packed)
    jax.block_until_ready((logpT, hT, cT))

    logpT_r, (hT_r, cT_r) = reference_seq(x_seq, h0, c0, params, mxu_bf16=True)
    assert jnp.allclose(logpT, logpT_r, atol=5e-3, rtol=5e-3)
    assert jnp.allclose(hT, hT_r, atol=5e-3, rtol=5e-3)
    assert jnp.allclose(cT, cT_r, atol=5e-3, rtol=5e-3)

    logpT_f, (hT_f, cT_f) = reference_seq(x_seq, h0, c0, params, mxu_bf16=False)
    assert jnp.allclose(logpT, logpT_f, atol=1e-1, rtol=1e-1)
    assert jnp.allclose(hT, hT_f, atol=1e-1, rtol=1e-1)
    assert jnp.allclose(cT, cT_f, atol=1e-1, rtol=1e-1)

    print("KERNEL_OK")
</pallas_src>

<mosaic_0001>
module attributes {stable_mosaic.version = 11 : i64} {
  func.func @lstm_seq_kernel(%arg0: i32, %arg1: i32, %arg2: memref<1x8x128xf32, #tpu.memory_space<vmem>>, %arg3: memref<8x128xf32, #tpu.memory_space<vmem>>, %arg4: memref<8x128xf32, #tpu.memory_space<vmem>>, %arg5: memref<128x512xbf16, #tpu.memory_space<vmem>>, %arg6: memref<128x512xbf16, #tpu.memory_space<vmem>>, %arg7: memref<1x512xf32, #tpu.memory_space<vmem>>, %arg8: memref<128x128xbf16, #tpu.memory_space<vmem>>, %arg9: memref<1x128xf32, #tpu.memory_space<vmem>>, %arg10: memref<1x8x128xf32, #tpu.memory_space<vmem>>, %arg11: memref<8x128xf32, #tpu.memory_space<vmem>>, %arg12: memref<8x128xf32, #tpu.memory_space<vmem>>, %arg13: memref<8x128xf32, #tpu.memory_space<vmem>>, %arg14: memref<8x128xf32, #tpu.memory_space<vmem>>) attributes {dimension_semantics = [#tpu.dimension_semantics<parallel>, #tpu.dimension_semantics<arbitrary>], iteration_bounds = array<i64: 1, 1>, scalar_prefetch = 0 : i64, scratch_operands = 2 : i64, tpu.core_type = #tpu.core_type<tc>, window_params = [{transform_indices = @transform_0, window_bounds = array<i64: 1, 8, 128>}, {transform_indices = @transform_1, window_bounds = array<i64: 8, 128>}, {transform_indices = @transform_2, window_bounds = array<i64: 8, 128>}, {pipeline_mode = #tpu.pipeline_mode<synchronous>, transform_indices = @transform_3, window_bounds = array<i64: 128, 512>}, {pipeline_mode = #tpu.pipeline_mode<synchronous>, transform_indices = @transform_4, window_bounds = array<i64: 128, 512>}, {pipeline_mode = #tpu.pipeline_mode<synchronous>, transform_indices = @transform_5, window_bounds = array<i64: 1, 512>}, {pipeline_mode = #tpu.pipeline_mode<synchronous>, transform_indices = @transform_6, window_bounds = array<i64: 128, 128>}, {pipeline_mode = #tpu.pipeline_mode<synchronous>, transform_indices = @transform_7, window_bounds = array<i64: 1, 128>}, {transform_indices = @transform_8, window_bounds = array<i64: 1, 8, 128>}, {transform_indices = @transform_9, window_bounds = array<i64: 8, 128>}, {transform_indices = @transform_10, window_bounds = array<i64: 8, 128>}]} {
    %c0_i32 = arith.constant 0 : i32
    %0 = arith.cmpi eq, %arg1, %c0_i32 : i32
    %1 = arith.extui %0 : i1 to i32
    %c0_i32_0 = arith.constant 0 : i32
    %2 = arith.cmpi ne, %1, %c0_i32_0 : i32
    scf.if %2 {
      %c0_33 = arith.constant 0 : index
      %c0_34 = arith.constant 0 : index
      %67 = vector.load %arg3[%c0_33, %c0_34] : memref<8x128xf32, #tpu.memory_space<vmem>>, vector<8x128xf32>
      %c0_35 = arith.constant 0 : index
      %c0_36 = arith.constant 0 : index
      %68 = vector.load %arg13[%c0_35, %c0_36] : memref<8x128xf32, #tpu.memory_space<vmem>>, vector<8x128xf32>
      tpu.vector_store %arg13[%c0_35, %c0_36], %67 {strides = array<i32>} : memref<8x128xf32, #tpu.memory_space<vmem>>, vector<8x128xf32>,
      %c0_37 = arith.constant 0 : index
      %c0_38 = arith.constant 0 : index
      %69 = vector.load %arg4[%c0_37, %c0_38] : memref<8x128xf32, #tpu.memory_space<vmem>>, vector<8x128xf32>
      %c0_39 = arith.constant 0 : index
      %c0_40 = arith.constant 0 : index
      %70 = vector.load %arg14[%c0_39, %c0_40] : memref<8x128xf32, #tpu.memory_space<vmem>>, vector<8x128xf32>
      tpu.vector_store %arg14[%c0_39, %c0_40], %69 {strides = array<i32>} : memref<8x128xf32, #tpu.memory_space<vmem>>, vector<8x128xf32>,
    } else {
    }
    %c0 = arith.constant 0 : index
    %c0_1 = arith.constant 0 : index
    %c0_2 = arith.constant 0 : index
    %3 = vector.load %arg2[%c0, %c0_1, %c0_2] : memref<1x8x128xf32, #tpu.memory_space<vmem>>, vector<1x8x128xf32>
    %4 = vector.shape_cast %3 : vector<1x8x128xf32> to vector<8x128xf32>
    %5 = arith.truncf %4 : vector<8x128xf32> to vector<8x128xbf16>
    %c0_3 = arith.constant 0 : index
    %c0_4 = arith.constant 0 : index
    %6 = vector.load %arg13[%c0_3, %c0_4] : memref<8x128xf32, #tpu.memory_space<vmem>>, vector<8x128xf32>
    %7 = arith.truncf %6 : vector<8x128xf32> to vector<8x128xbf16>
    %c0_5 = arith.constant 0 : index
    %c0_6 = arith.constant 0 : index
    %8 = vector.load %arg5[%c0_5, %c0_6] : memref<128x512xbf16, #tpu.memory_space<vmem>>, vector<128x512xbf16>
    %cst = arith.constant dense<0.000000e+00> : vector<8x512xf32>
    %9 = tpu.matmul %5, %8, %cst {dimension_numbers = #tpu.dot_dimension_numbers<[1], [0], [0], [1], [0, 0, 1, 1], [], []>} : vector<8x128xbf16>, vector<128x512xbf16>, vector<8x512xf32> -> vector<8x512xf32>
    %c0_7 = arith.constant 0 : index
    %c0_8 = arith.constant 0 : index
    %10 = vector.load %arg6[%c0_7, %c0_8] : memref<128x512xbf16, #tpu.memory_space<vmem>>, vector<128x512xbf16>
    %cst_9 = arith.constant dense<0.000000e+00> : vector<8x512xf32>
    %11 = tpu.matmul %7, %10, %cst_9 {dimension_numbers = #tpu.dot_dimension_numbers<[1], [0], [0], [1], [0, 0, 1, 1], [], []>} : vector<8x128xbf16>, vector<128x512xbf16>, vector<8x512xf32> -> vector<8x512xf32>
    %12 = arith.addf %9, %11 : vector<8x512xf32>
    %c0_10 = arith.constant 0 : index
    %c0_11 = arith.constant 0 : index
    %13 = vector.load %arg7[%c0_10, %c0_11] : memref<1x512xf32, #tpu.memory_space<vmem>>, vector<1x512xf32>
    %14 = vector.broadcast %13 : vector<1x512xf32> to vector<8x512xf32>
    %15 = arith.addf %12, %14 : vector<8x512xf32>
    %16 = vector.extract_strided_slice %15 {offsets = [0, 0], sizes = [8, 128], strides = [1, 1]} : vector<8x512xf32> to vector<8x128xf32>
    %17 = arith.negf %16 : vector<8x128xf32>
    %18 = math.exp %17 : vector<8x128xf32>
    %cst_12 = arith.constant 1.000000e+00 : f32
    %19 = vector.broadcast %cst_12 : f32 to vector<8x128xf32>
    %20 = arith.addf %19, %18 : vector<8x128xf32>
    %21 = arith.divf %19, %20 : vector<8x128xf32>
    %22 = vector.extract_strided_slice %15 {offsets = [0, 128], sizes = [8, 128], strides = [1, 1]} : vector<8x512xf32> to vector<8x128xf32>
    %23 = arith.negf %22 : vector<8x128xf32>
    %24 = math.exp %23 : vector<8x128xf32>
    %cst_13 = arith.constant 1.000000e+00 : f32
    %25 = vector.broadcast %cst_13 : f32 to vector<8x128xf32>
    %26 = arith.addf %25, %24 : vector<8x128xf32>
    %27 = arith.divf %25, %26 : vector<8x128xf32>
    %28 = vector.extract_strided_slice %15 {offsets = [0, 256], sizes = [8, 128], strides = [1, 1]} : vector<8x512xf32> to vector<8x128xf32>
    %29 = arith.negf %28 : vector<8x128xf32>
    %30 = math.exp %29 : vector<8x128xf32>
    %cst_14 = arith.constant 1.000000e+00 : f32
    %31 = vector.broadcast %cst_14 : f32 to vector<8x128xf32>
    %32 = arith.addf %31, %30 : vector<8x128xf32>
    %33 = arith.divf %31, %32 : vector<8x128xf32>
    %34 = vector.extract_strided_slice %15 {offsets = [0, 384], sizes = [8, 128], strides = [1, 1]} : vector<8x512xf32> to vector<8x128xf32>
    %35 = math.tanh %34 : vector<8x128xf32>
    %c0_15 = arith.constant 0 : index
    %c0_16 = arith.constant 0 : index
    %36 = vector.load %arg14[%c0_15, %c0_16] : memref<8x128xf32, #tpu.memory_space<vmem>>, vector<8x128xf32>
    %37 = arith.mulf %27, %36 : vector<8x128xf32>
    %38 = arith.mulf %21, %35 : vector<8x128xf32>
    %39 = arith.addf %37, %38 : vector<8x128xf32>
    %40 = math.tanh %39 : vector<8x128xf32>
    %41 = arith.mulf %33, %40 : vector<8x128xf32>
    %c0_17 = arith.constant 0 : index
    %c0_18 = arith.constant 0 : index
    %42 = vector.load %arg14[%c0_17, %c0_18] : memref<8x128xf32, #tpu.memory_space<vmem>>, vector<8x128xf32>
    tpu.vector_store %arg14[%c0_17, %c0_18], %39 {strides = array<i32>} : memref<8x128xf32, #tpu.memory_space<vmem>>, vector<8x128xf32>,
    %c0_19 = arith.constant 0 : index
    %c0_20 = arith.constant 0 : index
    %43 = vector.load %arg13[%c0_19, %c0_20] : memref<8x128xf32, #tpu.memory_space<vmem>>, vector<8x128xf32>
    tpu.vector_store %arg13[%c0_19, %c0_20], %41 {strides = array<i32>} : memref<8x128xf32, #tpu.memory_space<vmem>>, vector<8x128xf32>,
    %44 = arith.truncf %41 : vector<8x128xf32> to vector<8x128xbf16>
    %c0_21 = arith.constant 0 : index
    %c0_22 = arith.constant 0 : index
    %45 = vector.load %arg8[%c0_21, %c0_22] : memref<128x128xbf16, #tpu.memory_space<vmem>>, vector<128x128xbf16>
    %cst_23 = arith.constant dense<0.000000e+00> : vector<8x128xf32>
    %46 = tpu.matmul %44, %45, %cst_23 {dimension_numbers = #tpu.dot_dimension_numbers<[1], [0], [0], [1], [0, 0, 1, 1], [], []>} : vector<8x128xbf16>, vector<128x128xbf16>, vector<8x128xf32> -> vector<8x128xf32>
    %c0_24 = arith.constant 0 : index
    %c0_25 = arith.constant 0 : index
    %47 = vector.load %arg9[%c0_24, %c0_25] : memref<1x128xf32, #tpu.memory_space<vmem>>, vector<1x128xf32>
    %48 = vector.broadcast %47 : vector<1x128xf32> to vector<8x128xf32>
    %49 = arith.addf %46, %48 : vector<8x128xf32>
    %cst_26 = arith.constant dense<0xFF800000> : vector<8xf32>
    %50 = vector.multi_reduction <maximumf>, %49, %cst_26 [1] : vector<8x128xf32> to vector<8xf32>
    %51 = vector.shape_cast %50 : vector<8xf32> to vector<8x1xf32>
    %52 = vector.broadcast %51 : vector<8x1xf32> to vector<8x128xf32>
    %53 = arith.subf %49, %52 : vector<8x128xf32>
    %54 = math.exp %53 : vector<8x128xf32>
    %cst_27 = arith.constant dense<0.000000e+00> : vector<8xf32>
    %55 = vector.multi_reduction <add>, %54, %cst_27 [1] : vector<8x128xf32> to vector<8xf32>
    %56 = vector.shape_cast %55 : vector<8xf32> to vector<8x1xf32>
    %57 = math.log %56 : vector<8x1xf32>
    %58 = arith.addf %57, %51 : vector<8x1xf32>
    %59 = vector.broadcast %58 : vector<8x1xf32> to vector<8x128xf32>
    %60 = arith.subf %49, %59 : vector<8x128xf32>
    %c0_28 = arith.constant 0 : index
    %c0_29 = arith.constant 0 : index
    %c0_30 = arith.constant 0 : index
    %61 = vector.load %arg10[%c0_28, %c0_29, %c0_30] : memref<1x8x128xf32, #tpu.memory_space<vmem>>, vector<1x8x128xf32>
    %62 = vector.shape_cast %61 : vector<1x8x128xf32> to vector<8x128xf32>
    %63 = vector.shape_cast %60 : vector<8x128xf32> to vector<1x8x128xf32>
    tpu.vector_store %arg10[%c0_28, %c0_29, %c0_30], %63 {strides = array<i32>} : memref<1x8x128xf32, #tpu.memory_space<vmem>>, vector<1x8x128xf32>,
    %c0_i32_31 = arith.constant 0 : i32
    %64 = arith.cmpi eq, %arg1, %c0_i32_31 : i32
    %65 = arith.extui %64 : i1 to i32
    %c0_i32_32 = arith.constant 0 : i32
    %66 = arith.cmpi ne, %65, %c0_i32_32 : i32
    scf.if %66 {
      %c0_33 = arith.constant 0 : index
      %c0_34 = arith.constant 0 : index
      %67 = vector.load %arg11[%c0_33, %c0_34] : memref<8x128xf32, #tpu.memory_space<vmem>>, vector<8x128xf32>
      tpu.vector_store %arg11[%c0_33, %c0_34], %41 {strides = array<i32>} : memref<8x128xf32, #tpu.memory_space<vmem>>, vector<8x128xf32>,
      %c0_35 = arith.constant 0 : index
      %c0_36 = arith.constant 0 : index
      %68 = vector.load %arg12[%c0_35, %c0_36] : memref<8x128xf32, #tpu.memory_space<vmem>>, vector<8x128xf32>
      tpu.vector_store %arg12[%c0_35, %c0_36], %39 {strides = array<i32>} : memref<8x128xf32, #tpu.memory_space<vmem>>, vector<8x128xf32>,
    } else {
    }
    return
  }
  func.func @transform_0(%arg0: i32, %arg1: i32) -> (i32, i32, i32) {
    %c0_i32 = arith.constant 0 : i32
    %c0_i32_0 = arith.constant 0 : i32
    return %arg1, %arg0, %c0_i32 : i32, i32, i32
  }
  func.func @transform_1(%arg0: i32, %arg1: i32) -> (i32, i32) {
    %c0_i32 = arith.constant 0 : i32
    %c0_i32_0 = arith.constant 0 : i32
    return %arg0, %c0_i32 : i32, i32
  }
  func.func @transform_2(%arg0: i32, %arg1: i32) -> (i32, i32) {
    %c0_i32 = arith.constant 0 : i32
    %c0_i32_0 = arith.constant 0 : i32
    return %arg0, %c0_i32 : i32, i32
  }
  func.func @transform_3(%arg0: i32, %arg1: i32) -> (i32, i32) {
    %c0_i32 = arith.constant 0 : i32
    %c0_i32_0 = arith.constant 0 : i32
    %c0_i32_1 = arith.constant 0 : i32
    return %c0_i32, %c0_i32_0 : i32, i32
  }
  func.func @transform_4(%arg0: i32, %arg1: i32) -> (i32, i32) {
    %c0_i32 = arith.constant 0 : i32
    %c0_i32_0 = arith.constant 0 : i32
    %c0_i32_1 = arith.constant 0 : i32
    return %c0_i32, %c0_i32_0 : i32, i32
  }
  func.func @transform_5(%arg0: i32, %arg1: i32) -> (i32, i32) {
    %c0_i32 = arith.constant 0 : i32
    %c0_i32_0 = arith.constant 0 : i32
    %c0_i32_1 = arith.constant 0 : i32
    return %c0_i32, %c0_i32_0 : i32, i32
  }
  func.func @transform_6(%arg0: i32, %arg1: i32) -> (i32, i32) {
    %c0_i32 = arith.constant 0 : i32
    %c0_i32_0 = arith.constant 0 : i32
    %c0_i32_1 = arith.constant 0 : i32
    return %c0_i32, %c0_i32_0 : i32, i32
  }
  func.func @transform_7(%arg0: i32, %arg1: i32) -> (i32, i32) {
    %c0_i32 = arith.constant 0 : i32
    %c0_i32_0 = arith.constant 0 : i32
    %c0_i32_1 = arith.constant 0 : i32
    return %c0_i32, %c0_i32_0 : i32, i32
  }
  func.func @transform_8(%arg0: i32, %arg1: i32) -> (i32, i32, i32) {
    %c0_i32 = arith.constant 0 : i32
    %c0_i32_0 = arith.constant 0 : i32
    return %arg1, %arg0, %c0_i32 : i32, i32, i32
  }
  func.func @transform_9(%arg0: i32, %arg1: i32) -> (i32, i32) {
    %c0_i32 = arith.constant 0 : i32
    %c0_i32_0 = arith.constant 0 : i32
    return %arg0, %c0_i32 : i32, i32
  }
  func.func @transform_10(%arg0: i32, %arg1: i32) -> (i32, i32) {
    %c0_i32 = arith.constant 0 : i32
    %c0_i32_0 = arith.constant 0 : i32
    return %arg0, %c0_i32 : i32, i32
  }
}

</mosaic_0001>

<llo_original>
// kernel: forward.1
$region0: #{forward.1}
  #allocation0 [shape = 'u32[]', space=smem, size = 0x4, offset = 0x4, fixed_abs, tag = 'smem constant byte address 0x4 - core index']
  #allocation1 [shape = 'u32[72,128]{1,0:T(1,128)}', space=vmem, size = 0x9000, scoped, tag = 'internal scratch']
  #allocation2 [shape = 'f32[8,128]{1,0:T(8,128)}', space=vmem, size = 0x1000, scoped, tag = 'scratch operand']
  #allocation3 [shape = 'f32[8,128]{1,0:T(8,128)}', space=vmem, size = 0x1000, scoped, tag = 'scratch operand']
  %s0 = inlined_call_operand.vmem [shape: f32[1,8,128], index: 0, kind: input, shape index: {}]
  %s1 = inlined_call_operand.vmem [shape: f32[8,128], index: 1, kind: input, shape index: {}, may-alias: {1,9}]
  %s2 = inlined_call_operand.vmem [shape: f32[8,128], index: 2, kind: input, shape index: {}, may-alias: {2,10}]
  %s3 = inlined_call_operand.hbm [shape: bf16[128,512], index: 3, kind: input, shape index: {}]
  %s4 = inlined_call_operand.hbm [shape: bf16[128,512], index: 4, kind: input, shape index: {}]
  %s5 = inlined_call_operand.vmem [shape: f32[1,512], index: 5, kind: input, shape index: {}]
  %s6 = inlined_call_operand.hbm [shape: bf16[128,128], index: 6, kind: input, shape index: {}]
  %s7 = inlined_call_operand.vmem [shape: f32[1,128], index: 7, kind: input, shape index: {}]
  %s8 = inlined_call_operand.vmem [shape: f32[1,8,128], index: 8, kind: output, shape index: {0}]
  %s9 = inlined_call_operand.vmem [shape: f32[8,128], index: 9, kind: output, shape index: {1}, may-alias: {1,9}]
  %s10 = inlined_call_operand.vmem [shape: f32[8,128], index: 10, kind: output, shape index: {2}, may-alias: {2,10}]
  %11 = xla_tuple %s8, %s9, %s10
  %s12 = sld [smem:[#allocation0]]
  $region78: #{forward.1} parent=0
    _
  %s14 = ssub.s32 1, %s12
  %s15 = scalar_select 0, %s14, %s12
  $region1: #{forward.1} parent=0
    #allocation4 [shape = 'u8[131072]{0}', space=vmem, size = 0x20000, scoped, tag = 'input window, operand 3, single buffered']
    #allocation5 [shape = 's32[1]{0}', space=sflag, size = 0x4, scoped, tag = 'scoped memory for forward.1']
    #allocation6 [shape = 'u8[131072]{0}', space=vmem, size = 0x20000, scoped, tag = 'input window, operand 4, single buffered']
    #allocation7 [shape = 's32[1]{0}', space=sflag, size = 0x4, scoped, tag = 'scoped memory for forward.1']
    #allocation8 [shape = 'u8[32768]{0}', space=vmem, size = 0x8000, scoped, tag = 'input window, operand 6, single buffered']
    %16 = vsyncpa [#allocation5], 0
    %17 = vsyncpa [#allocation7], 0
    // Predicated region
    $region2: #{forward.1} parent=1 // pred_check
      _
    $region3: #{forward.1} parent=1 // pred_check_branch
      %19 = sbr.rel (0) target = $region5
    $region4: #{forward.1} parent=1 // pred_region
      _
    $region5: #{forward.1} parent=1 // pred_fallthru
      _
    // Predicated region
    $region6: #{forward.1} parent=1 // pred_check
      _
    $region7: #{forward.1} parent=1 // pred_check_branch
      %21 = sbr.rel (0) target = $region9
    $region8: #{forward.1} parent=1 // pred_region
      _
    $region9: #{forward.1} parent=1 // pred_fallthru
      _
    // Predicated region
    $region10: #{forward.1} parent=1 // pred_check
      _
    $region11: #{forward.1} parent=1 // pred_check_branch
      %23 = sbr.rel (0) target = $region13
    $region12: #{forward.1} parent=1 // pred_region
      _
    $region13: #{forward.1} parent=1 // pred_fallthru
      _
    // Predicated region
    $region14: #{forward.1} parent=1 // pred_check
      _
    $region15: #{forward.1} parent=1 // pred_check_branch
      %25 = sbr.rel (0) target = $region17
    $region16: #{forward.1} parent=1 // pred_region
      %27 = vsyncadd [#allocation5], 0
      %s28 = sshll.u32 %s3, 4
      %s29 = int_to_ptr.hbm [resolvable:$true] %s28
      %s30 = sshll.u32 [#allocation4], 4
      %s31 = int_to_ptr.vmem [resolvable:$true] %s30
      %36 = dma.hbm_to_vmem [thread:$0]  %s29, 4096, %s31, [#allocation5], 256, 256, 16
    $region17: #{forward.1} parent=1 // pred_fallthru
      _
    // Predicated region
    $region18: #{forward.1} parent=1 // pred_check
      _
    $region19: #{forward.1} parent=1 // pred_check_branch
      %38 = sbr.rel (0) target = $region21
    $region20: #{forward.1} parent=1 // pred_region
      %40 = vsyncadd [#allocation7], 0
      %s41 = sshll.u32 %s4, 4
      %s42 = int_to_ptr.hbm [resolvable:$true] %s41
      %s43 = sshll.u32 [#allocation6], 4
      %s44 = int_to_ptr.vmem [resolvable:$true] %s43
      %49 = dma.hbm_to_vmem [thread:$0]  %s42, 4096, %s44, [#allocation7], 256, 256, 16
    $region21: #{forward.1} parent=1 // pred_fallthru
      _
    // Predicated region
    $region22: #{forward.1} parent=1 // pred_check
      _
    $region23: #{forward.1} parent=1 // pred_check_branch
      %51 = sbr.rel (0) target = $region25
    $region24: #{forward.1} parent=1 // pred_region
      _
    $region25: #{forward.1} parent=1 // pred_fallthru
      _
    // Predicated region
    $region26: #{forward.1} parent=1 // pred_check
      _
    $region27: #{forward.1} parent=1 // pred_check_branch
      %53 = sbr.rel (0) target = $region29
    $region28: #{forward.1} parent=1 // pred_region
      %55 = vsyncadd [#allocation7], 0
      %s56 = sshll.u32 %s6, 4
      %s57 = int_to_ptr.hbm [resolvable:$true] %s56
      %s58 = sshll.u32 [#allocation8], 4
      %s59 = int_to_ptr.vmem [resolvable:$true] %s58
      %64 = dma.hbm_to_vmem [thread:$0]  %s57, 1024, %s59, [#allocation7], 64, 64, 4
    $region29: #{forward.1} parent=1 // pred_fallthru
      _
    // Predicated region
    $region30: #{forward.1} parent=1 // pred_check
      _
    $region31: #{forward.1} parent=1 // pred_check_branch
      %66 = sbr.rel (0) target = $region33
    $region32: #{forward.1} parent=1 // pred_region
      _
    $region33: #{forward.1} parent=1 // pred_fallthru
      _
    // Predicated region
    $region34: #{forward.1} parent=1 // pred_check
      _
    $region35: #{forward.1} parent=1 // pred_check_branch
      %68 = sbr.rel (0) target = $region37
    $region36: #{forward.1} parent=1 // pred_region
      %70 = dma.done [#allocation5], 4096
    $region37: #{forward.1} parent=1 // pred_fallthru
      _
    // Predicated region
    $region38: #{forward.1} parent=1 // pred_check
      _
    $region39: #{forward.1} parent=1 // pred_check_branch
      %72 = sbr.rel (0) target = $region41
    $region40: #{forward.1} parent=1 // pred_region
      %74 = dma.done [#allocation7], 4096
    $region41: #{forward.1} parent=1 // pred_fallthru
      _
    // Predicated region
    $region42: #{forward.1} parent=1 // pred_check
      _
    $region43: #{forward.1} parent=1 // pred_check_branch
      %76 = sbr.rel (0) target = $region45
    $region44: #{forward.1} parent=1 // pred_region
      %78 = dma.done [#allocation7], 1024
    $region45: #{forward.1} parent=1 // pred_fallthru
      _
    %p79 = scmp.eq.s32.totalorder 0, 0
    // Predicated region
    $region46: #{forward.1} parent=1 // pred_check
      %p80 = pneg %p79
    $region47: #{forward.1} parent=1 // pred_check_branch
      %82 = sbr.rel (%p80) target = $region49
    $region48: #{forward.1} parent=1 // pred_region
      %v83 = vld [vmem:[%s1] sm:$0xff]
      %84 = vst [vmem:[#allocation2] sm:$0xff] %v83
      %v85 = vld [vmem:[%s2] sm:$0xff]
      %86 = vst [vmem:[#allocation3] sm:$0xff] %v85
    $region49: #{forward.1} parent=1 // pred_fallthru
      _
    %v87 = vld [vmem:[%s0] sm:$0xff]
    %v88 = vpack.c.bf16 %v87, %v87
    %v89 = vld [vmem:[#allocation2] sm:$0xff]
    %v90 = vpack.c.bf16 %v89, %v89
    %v91 = vld [vmem:[#allocation4] sm:$0xff]
    %v92 = vld [vmem:[#allocation4 + $0x8] sm:$0xff]
    %v93 = vld [vmem:[#allocation4 + $0x10] sm:$0xff]
    %v94 = vld [vmem:[#allocation4 + $0x18] sm:$0xff]
    %v95 = vld [vmem:[#allocation4 + $0x20] sm:$0xff]
    %v96 = vld [vmem:[#allocation4 + $0x28] sm:$0xff]
    %v97 = vld [vmem:[#allocation4 + $0x30] sm:$0xff]
    %v98 = vld [vmem:[#allocation4 + $0x38] sm:$0xff]
    %v99 = vld [vmem:[#allocation4 + $0x40] sm:$0xff]
    %v100 = vld [vmem:[#allocation4 + $0x48] sm:$0xff]
    %v101 = vld [vmem:[#allocation4 + $0x50] sm:$0xff]
    %v102 = vld [vmem:[#allocation4 + $0x58] sm:$0xff]
    %v103 = vld [vmem:[#allocation4 + $0x60] sm:$0xff]
    %v104 = vld [vmem:[#allocation4 + $0x68] sm:$0xff]
    %v105 = vld [vmem:[#allocation4 + $0x70] sm:$0xff]
    %v106 = vld [vmem:[#allocation4 + $0x78] sm:$0xff]
    %v107 = vld [vmem:[#allocation4 + $0x80] sm:$0xff]
    %v108 = vld [vmem:[#allocation4 + $0x88] sm:$0xff]
    %v109 = vld [vmem:[#allocation4 + $0x90] sm:$0xff]
    %v110 = vld [vmem:[#allocation4 + $0x98] sm:$0xff]
    %v111 = vld [vmem:[#allocation4 + $0xa0] sm:$0xff]
    %v112 = vld [vmem:[#allocation4 + $0xa8] sm:$0xff]
    %v113 = vld [vmem:[#allocation4 + $0xb0] sm:$0xff]
    %v114 = vld [vmem:[#allocation4 + $0xb8] sm:$0xff]
    %v115 = vld [vmem:[#allocation4 + $0xc0] sm:$0xff]
    %v116 = vld [vmem:[#allocation4 + $0xc8] sm:$0xff]
    %v117 = vld [vmem:[#allocation4 + $0xd0] sm:$0xff]
    %v118 = vld [vmem:[#allocation4 + $0xd8] sm:$0xff]
    %v119 = vld [vmem:[#allocation4 + $0xe0] sm:$0xff]
    %v120 = vld [vmem:[#allocation4 + $0xe8] sm:$0xff]
    %v121 = vld [vmem:[#allocation4 + $0xf0] sm:$0xff]
    %v122 = vld [vmem:[#allocation4 + $0xf8] sm:$0xff]
    %v123 = vld [vmem:[#allocation6] sm:$0xff]
    %v124 = vld [vmem:[#allocation6 + $0x8] sm:$0xff]
    %v125 = vld [vmem:[#allocation6 + $0x10] sm:$0xff]
    %v126 = vld [vmem:[#allocation6 + $0x18] sm:$0xff]
    %v127 = vld [vmem:[#allocation6 + $0x20] sm:$0xff]
    %v128 = vld [vmem:[#allocation6 + $0x28] sm:$0xff]
    %v129 = vld [vmem:[#allocation6 + $0x30] sm:$0xff]
    %v130 = vld [vmem:[#allocation6 + $0x38] sm:$0xff]
    %v131 = vld [vmem:[#allocation6 + $0x40] sm:$0xff]
    %v132 = vld [vmem:[#allocation6 + $0x48] sm:$0xff]
    %v133 = vld [vmem:[#allocation6 + $0x50] sm:$0xff]
    %v134 = vld [vmem:[#allocation6 + $0x58] sm:$0xff]
    %v135 = vld [vmem:[#allocation6 + $0x60] sm:$0xff]
    %v136 = vld [vmem:[#allocation6 + $0x68] sm:$0xff]
    %v137 = vld [vmem:[#allocation6 + $0x70] sm:$0xff]
    %v138 = vld [vmem:[#allocation6 + $0x78] sm:$0xff]
    %v139 = vld [vmem:[#allocation6 + $0x80] sm:$0xff]
    %v140 = vld [vmem:[#allocation6 + $0x88] sm:$0xff]
    %v141 = vld [vmem:[#allocation6 + $0x90] sm:$0xff]
    %v142 = vld [vmem:[#allocation6 + $0x98] sm:$0xff]
    %v143 = vld [vmem:[#allocation6 + $0xa0] sm:$0xff]
    %v144 = vld [vmem:[#allocation6 + $0xa8] sm:$0xff]
    %v145 = vld [vmem:[#allocation6 + $0xb0] sm:$0xff]
    %v146 = vld [vmem:[#allocation6 + $0xb8] sm:$0xff]
    %v147 = vld [vmem:[#allocation6 + $0xc0] sm:$0xff]
    %v148 = vld [vmem:[#allocation6 + $0xc8] sm:$0xff]
    %v149 = vld [vmem:[#allocation6 + $0xd0] sm:$0xff]
    %v150 = vld [vmem:[#allocation6 + $0xd8] sm:$0xff]
    %v151 = vld [vmem:[#allocation6 + $0xe0] sm:$0xff]
    %v152 = vld [vmem:[#allocation6 + $0xe8] sm:$0xff]
    %v153 = vld [vmem:[#allocation6 + $0xf0] sm:$0xff]
    %v154 = vld [vmem:[#allocation6 + $0xf8] sm:$0xff]
    %v187 = vunpack.c.l.b16 %v123
    %v188 = vunpack.c.h.b16 %v123
    %v189 = vunpack.c.l.b16 %v124
    %v190 = vunpack.c.h.b16 %v124
    %v191 = vunpack.c.l.b16 %v125
    %v192 = vunpack.c.h.b16 %v125
    %v193 = vunpack.c.l.b16 %v126
    %v194 = vunpack.c.h.b16 %v126
    %v195 = vunpack.c.l.b16 %v127
    %v196 = vunpack.c.h.b16 %v127
    %v197 = vunpack.c.l.b16 %v128
    %v198 = vunpack.c.h.b16 %v128
    %v199 = vunpack.c.l.b16 %v129
    %v200 = vunpack.c.h.b16 %v129
    %v201 = vunpack.c.l.b16 %v130
    %v202 = vunpack.c.h.b16 %v130
    %v203 = vunpack.c.l.b16 %v131
    %v204 = vunpack.c.h.b16 %v131
    %v205 = vunpack.c.l.b16 %v132
    %v206 = vunpack.c.h.b16 %v132
    %v207 = vunpack.c.l.b16 %v133
    %v208 = vunpack.c.h.b16 %v133
    %v209 = vunpack.c.l.b16 %v134
    %v210 = vunpack.c.h.b16 %v134
    %v211 = vunpack.c.l.b16 %v135
    %v212 = vunpack.c.h.b16 %v135
    %v213 = vunpack.c.l.b16 %v136
    %v214 = vunpack.c.h.b16 %v136
    %v215 = vunpack.c.l.b16 %v137
    %v216 = vunpack.c.h.b16 %v137
    %v217 = vunpack.c.l.b16 %v138
    %v218 = vunpack.c.h.b16 %v138
    %v219 = vunpack.c.l.b16 %v139
    %v220 = vunpack.c.h.b16 %v139
    %v221 = vunpack.c.l.b16 %v140
    %v222 = vunpack.c.h.b16 %v140
    %v223 = vunpack.c.l.b16 %v141
    %v224 = vunpack.c.h.b16 %v141
    %v225 = vunpack.c.l.b16 %v142
    %v226 = vunpack.c.h.b16 %v142
    %v227 = vunpack.c.l.b16 %v143
    %v228 = vunpack.c.h.b16 %v143
    %v229 = vunpack.c.l.b16 %v144
    %v230 = vunpack.c.h.b16 %v144
    %v231 = vunpack.c.l.b16 %v145
    %v232 = vunpack.c.h.b16 %v145
    %v233 = vunpack.c.l.b16 %v146
    %v234 = vunpack.c.h.b16 %v146
    %v235 = vunpack.c.l.b16 %v147
    %v236 = vunpack.c.h.b16 %v147
    %v237 = vunpack.c.l.b16 %v148
    %v238 = vunpack.c.h.b16 %v148
    %v239 = vunpack.c.l.b16 %v149
    %v240 = vunpack.c.h.b16 %v149
    %v241 = vunpack.c.l.b16 %v150
    %v242 = vunpack.c.h.b16 %v150
    %v243 = vunpack.c.l.b16 %v151
    %v244 = vunpack.c.h.b16 %v151
    %v245 = vunpack.c.l.b16 %v152
    %v246 = vunpack.c.h.b16 %v152
    %v247 = vunpack.c.l.b16 %v153
    %v248 = vunpack.c.h.b16 %v153
    %v249 = vunpack.c.l.b16 %v154
    %v250 = vunpack.c.h.b16 %v154
    %v251 = vpack.c.b16 %v191, %v187
    %v252 = vpack.c.b16 %v192, %v188
    %v253 = vpack.c.b16 %v193, %v189
    %v254 = vpack.c.b16 %v194, %v190
    %v255 = vpack.c.b16 %v199, %v195
    %v256 = vpack.c.b16 %v200, %v196
    %v257 = vpack.c.b16 %v201, %v197
    %v258 = vpack.c.b16 %v202, %v198
    %v259 = vpack.c.b16 %v207, %v203
    %v260 = vpack.c.b16 %v208, %v204
    %v261 = vpack.c.b16 %v209, %v205
    %v262 = vpack.c.b16 %v210, %v206
    %v263 = vpack.c.b16 %v215, %v211
    %v264 = vpack.c.b16 %v216, %v212
    %v265 = vpack.c.b16 %v217, %v213
    %v266 = vpack.c.b16 %v218, %v214
    %v267 = vpack.c.b16 %v223, %v219
    %v268 = vpack.c.b16 %v224, %v220
    %v269 = vpack.c.b16 %v225, %v221
    %v270 = vpack.c.b16 %v226, %v222
    %v271 = vpack.c.b16 %v231, %v227
    %v272 = vpack.c.b16 %v232, %v228
    %v273 = vpack.c.b16 %v233, %v229
    %v274 = vpack.c.b16 %v234, %v230
    %v275 = vpack.c.b16 %v239, %v235
    %v276 = vpack.c.b16 %v240, %v236
    %v277 = vpack.c.b16 %v241, %v237
    %v278 = vpack.c.b16 %v242, %v238
    %v279 = vpack.c.b16 %v247, %v243
    %v280 = vpack.c.b16 %v248, %v244
    %v281 = vpack.c.b16 %v249, %v245
    %v282 = vpack.c.b16 %v250, %v246
    %315 = vmatpush.bf16.msra.mxu0 %v279
    %316 = vmatpush.bf16.msra.mxu0 %v275
    %317 = vmatpush.bf16.msra.mxu0 %v271
    %318 = vmatpush.bf16.msra.mxu0 %v267
    %319 = vmatpush.bf16.msra.mxu0 %v263
    %320 = vmatpush.bf16.msra.mxu0 %v259
    %321 = vmatpush.bf16.msra.mxu0 %v255
    %322 = vmatpush.bf16.msra.mxu0 %v251
    %323 = vmatmul.bf16.gmra.mxu0 %v90
    %v324 = vpop.f32.mrf.mxu0
    %v325 = vadd.f32 0.0, %v324
    %v326 = vpop.f32.mrf.mxu0
    %327 = vdwg.mxu0
    %328 = vmatpush.bf16.msra.mxu0 %v280
    %329 = vmatpush.bf16.msra.mxu0 %v276
    %330 = vmatpush.bf16.msra.mxu0 %v272
    %331 = vmatpush.bf16.msra.mxu0 %v268
    %332 = vmatpush.bf16.msra.mxu0 %v264
    %333 = vmatpush.bf16.msra.mxu0 %v260
    %334 = vmatpush.bf16.msra.mxu0 %v256
    %335 = vmatpush.bf16.msra.mxu0 %v252
    %336 = vmatmul.bf16.gmra.mxu0 %v90
    %v337 = vpop.f32.mrf.mxu0
    %v338 = vadd.f32 0.0, %v337
    %v339 = vpop.f32.mrf.mxu0
    %340 = vdwg.mxu0
    %341 = vmatpush.bf16.msra.mxu0 %v281
    %342 = vmatpush.bf16.msra.mxu0 %v277
    %343 = vmatpush.bf16.msra.mxu0 %v273
    %344 = vmatpush.bf16.msra.mxu0 %v269
    %345 = vmatpush.bf16.msra.mxu0 %v265
    %346 = vmatpush.bf16.msra.mxu0 %v261
    %347 = vmatpush.bf16.msra.mxu0 %v257
    %348 = vmatpush.bf16.msra.mxu0 %v253
    %349 = vmatmul.bf16.gmra.mxu0 %v90
    %v350 = vpop.f32.mrf.mxu0
    %v351 = vadd.f32 0.0, %v350
    %v352 = vpop.f32.mrf.mxu0
    %353 = vdwg.mxu0
    %354 = vmatpush.bf16.msra.mxu0 %v282
    %355 = vmatpush.bf16.msra.mxu0 %v278
    %356 = vmatpush.bf16.msra.mxu0 %v274
    %357 = vmatpush.bf16.msra.mxu0 %v270
    %358 = vmatpush.bf16.msra.mxu0 %v266
    %359 = vmatpush.bf16.msra.mxu0 %v262
    %360 = vmatpush.bf16.msra.mxu0 %v258
    %361 = vmatpush.bf16.msra.mxu0 %v254
    %362 = vmatmul.bf16.gmra.mxu0 %v90
    %v363 = vpop.f32.mrf.mxu0
    %v364 = vadd.f32 0.0, %v363
    %v365 = vpop.f32.mrf.mxu0
    %366 = vdwg.mxu0
    %v399 = vunpack.c.l.b16 %v91
    %v400 = vunpack.c.h.b16 %v91
    %v401 = vunpack.c.l.b16 %v92
    %v402 = vunpack.c.h.b16 %v92
    %v403 = vunpack.c.l.b16 %v93
    %v404 = vunpack.c.h.b16 %v93
    %v405 = vunpack.c.l.b16 %v94
    %v406 = vunpack.c.h.b16 %v94
    %v407 = vunpack.c.l.b16 %v95
    %v408 = vunpack.c.h.b16 %v95
    %v409 = vunpack.c.l.b16 %v96
    %v410 = vunpack.c.h.b16 %v96
    %v411 = vunpack.c.l.b16 %v97
    %v412 = vunpack.c.h.b16 %v97
    %v413 = vunpack.c.l.b16 %v98
    %v414 = vunpack.c.h.b16 %v98
    %v415 = vunpack.c.l.b16 %v99
    %v416 = vunpack.c.h.b16 %v99
    %v417 = vunpack.c.l.b16 %v100
    %v418 = vunpack.c.h.b16 %v100
    %v419 = vunpack.c.l.b16 %v101
    %v420 = vunpack.c.h.b16 %v101
    %v421 = vunpack.c.l.b16 %v102
    %v422 = vunpack.c.h.b16 %v102
    %v423 = vunpack.c.l.b16 %v103
    %v424 = vunpack.c.h.b16 %v103
    %v425 = vunpack.c.l.b16 %v104
    %v426 = vunpack.c.h.b16 %v104
    %v427 = vunpack.c.l.b16 %v105
    %v428 = vunpack.c.h.b16 %v105
    %v429 = vunpack.c.l.b16 %v106
    %v430 = vunpack.c.h.b16 %v106
    %v431 = vunpack.c.l.b16 %v107
    %v432 = vunpack.c.h.b16 %v107
    %v433 = vunpack.c.l.b16 %v108
    %v434 = vunpack.c.h.b16 %v108
    %v435 = vunpack.c.l.b16 %v109
    %v436 = vunpack.c.h.b16 %v109
    %v437 = vunpack.c.l.b16 %v110
    %v438 = vunpack.c.h.b16 %v110
    %v439 = vunpack.c.l.b16 %v111
    %v440 = vunpack.c.h.b16 %v111
    %v441 = vunpack.c.l.b16 %v112
    %v442 = vunpack.c.h.b16 %v112
    %v443 = vunpack.c.l.b16 %v113
    %v444 = vunpack.c.h.b16 %v113
    %v445 = vunpack.c.l.b16 %v114
    %v446 = vunpack.c.h.b16 %v114
    %v447 = vunpack.c.l.b16 %v115
    %v448 = vunpack.c.h.b16 %v115
    %v449 = vunpack.c.l.b16 %v116
    %v450 = vunpack.c.h.b16 %v116
    %v451 = vunpack.c.l.b16 %v117
    %v452 = vunpack.c.h.b16 %v117
    %v453 = vunpack.c.l.b16 %v118
    %v454 = vunpack.c.h.b16 %v118
    %v455 = vunpack.c.l.b16 %v119
    %v456 = vunpack.c.h.b16 %v119
    %v457 = vunpack.c.l.b16 %v120
    %v458 = vunpack.c.h.b16 %v120
    %v459 = vunpack.c.l.b16 %v121
    %v460 = vunpack.c.h.b16 %v121
    %v461 = vunpack.c.l.b16 %v122
    %v462 = vunpack.c.h.b16 %v122
    %v463 = vpack.c.b16 %v403, %v399
    %v464 = vpack.c.b16 %v404, %v400
    %v465 = vpack.c.b16 %v405, %v401
    %v466 = vpack.c.b16 %v406, %v402
    %v467 = vpack.c.b16 %v411, %v407
    %v468 = vpack.c.b16 %v412, %v408
    %v469 = vpack.c.b16 %v413, %v409
    %v470 = vpack.c.b16 %v414, %v410
    %v471 = vpack.c.b16 %v419, %v415
    %v472 = vpack.c.b16 %v420, %v416
    %v473 = vpack.c.b16 %v421, %v417
    %v474 = vpack.c.b16 %v422, %v418
    %v475 = vpack.c.b16 %v427, %v423
    %v476 = vpack.c.b16 %v428, %v424
    %v477 = vpack.c.b16 %v429, %v425
    %v478 = vpack.c.b16 %v430, %v426
    %v479 = vpack.c.b16 %v435, %v431
    %v480 = vpack.c.b16 %v436, %v432
    %v481 = vpack.c.b16 %v437, %v433
    %v482 = vpack.c.b16 %v438, %v434
    %v483 = vpack.c.b16 %v443, %v439
    %v484 = vpack.c.b16 %v444, %v440
    %v485 = vpack.c.b16 %v445, %v441
    %v486 = vpack.c.b16 %v446, %v442
    %v487 = vpack.c.b16 %v451, %v447
    %v488 = vpack.c.b16 %v452, %v448
    %v489 = vpack.c.b16 %v453, %v449
    %v490 = vpack.c.b16 %v454, %v450
    %v491 = vpack.c.b16 %v459, %v455
    %v492 = vpack.c.b16 %v460, %v456
    %v493 = vpack.c.b16 %v461, %v457
    %v494 = vpack.c.b16 %v462, %v458
    %527 = vmatpush.bf16.msra.mxu0 %v491
    %528 = vmatpush.bf16.msra.mxu0 %v487
    %529 = vmatpush.bf16.msra.mxu0 %v483
    %530 = vmatpush.bf16.msra.mxu0 %v479
    %531 = vmatpush.bf16.msra.mxu0 %v475
    %532 = vmatpush.bf16.msra.mxu0 %v471
    %533 = vmatpush.bf16.msra.mxu0 %v467
    %534 = vmatpush.bf16.msra.mxu0 %v463
    %535 = vmatmul.bf16.gmra.mxu0 %v88
    %v536 = vpop.f32.mrf.mxu0
    %v537 = vadd.f32 %v325, %v536
    %v538 = vpop.f32.mrf.mxu0
    %539 = vdwg.mxu0
    %540 = vmatpush.bf16.msra.mxu0 %v492
    %541 = vmatpush.bf16.msra.mxu0 %v488
    %542 = vmatpush.bf16.msra.mxu0 %v484
    %543 = vmatpush.bf16.msra.mxu0 %v480
    %544 = vmatpush.bf16.msra.mxu0 %v476
    %545 = vmatpush.bf16.msra.mxu0 %v472
    %546 = vmatpush.bf16.msra.mxu0 %v468
    %547 = vmatpush.bf16.msra.mxu0 %v464
    %548 = vmatmul.bf16.gmra.mxu0 %v88
    %v549 = vpop.f32.mrf.mxu0
    %v550 = vadd.f32 %v338, %v549
    %v551 = vpop.f32.mrf.mxu0
    %552 = vdwg.mxu0
    %553 = vmatpush.bf16.msra.mxu0 %v493
    %554 = vmatpush.bf16.msra.mxu0 %v489
    %555 = vmatpush.bf16.msra.mxu0 %v485
    %556 = vmatpush.bf16.msra.mxu0 %v481
    %557 = vmatpush.bf16.msra.mxu0 %v477
    %558 = vmatpush.bf16.msra.mxu0 %v473
    %559 = vmatpush.bf16.msra.mxu0 %v469
    %560 = vmatpush.bf16.msra.mxu0 %v465
    %561 = vmatmul.bf16.gmra.mxu0 %v88
    %v562 = vpop.f32.mrf.mxu0
    %v563 = vadd.f32 %v351, %v562
    %v564 = vpop.f32.mrf.mxu0
    %565 = vdwg.mxu0
    %566 = vmatpush.bf16.msra.mxu0 %v494
    %567 = vmatpush.bf16.msra.mxu0 %v490
    %568 = vmatpush.bf16.msra.mxu0 %v486
    %569 = vmatpush.bf16.msra.mxu0 %v482
    %570 = vmatpush.bf16.msra.mxu0 %v478
    %571 = vmatpush.bf16.msra.mxu0 %v474
    %572 = vmatpush.bf16.msra.mxu0 %v470
    %573 = vmatpush.bf16.msra.mxu0 %v466
    %574 = vmatmul.bf16.gmra.mxu0 %v88
    %v575 = vpop.f32.mrf.mxu0
    %v576 = vadd.f32 %v364, %v575
    %v577 = vpop.f32.mrf.mxu0
    %578 = vdwg.mxu0
    %v579 = vld [vmem:[%s5] sm:$0xf]
    %v581 = vperm.slane %v579, 0
    %v582 = vperm.slane %v579, 1
    %v583 = vperm.slane %v579, 2
    %v584 = vperm.slane %v579, 3
    %v589 = vadd.f32 %v537, %v581
    %v590 = vadd.f32 %v550, %v582
    %v591 = vadd.f32 %v563, %v583
    %v592 = vadd.f32 %v576, %v584
    %v593 = vxor.u32 %v589, 2147483648
    %v594 = vmul.f32 %v593, 1.442695
    %v595 = vpow.pop %v594
    %v596 = vadd.f32 %v595, 1.0
    %v597 = vrcp.pop %v596
    %v598 = vmul.f32 %v596, %v597
    %v599 = vsub.f32 1.0, %v598
    %v600 = vmul.f32 %v597, %v599
    %v601 = vadd.f32 %v597, %v600
    %vm602 = vweird.f32 %v596
    %vm603 = vweird.f32 %v597
    %vm604 = vmor %vm602, %vm603
    %v605 = vsel %vm604, %v597, %v601
    %v606 = vand.u32 2147483647, %v596
    %vm607 = vcmp.eq.f32.partialorder %v606, 8.507059e+37
    %v608 = vand.u32 %v596, 2147483648
    %v609 = vor.u32 1.1754944e-38, %v608
    %v610 = vsel %vm607, %v609, %v605
    %v611 = vmul.f32 1.0, %v610
    %v612 = vxor.u32 %v590, 2147483648
    %v613 = vmul.f32 %v612, 1.442695
    %v614 = vpow.pop %v613
    %v615 = vadd.f32 %v614, 1.0
    %v616 = vrcp.pop %v615
    %v617 = vmul.f32 %v615, %v616
    %v618 = vsub.f32 1.0, %v617
    %v619 = vmul.f32 %v616, %v618
    %v620 = vadd.f32 %v616, %v619
    %vm621 = vweird.f32 %v615
    %vm622 = vweird.f32 %v616
    %vm623 = vmor %vm621, %vm622
    %v624 = vsel %vm623, %v616, %v620
    %v625 = vand.u32 2147483647, %v615
    %vm626 = vcmp.eq.f32.partialorder %v625, 8.507059e+37
    %v627 = vand.u32 %v615, 2147483648
    %v628 = vor.u32 1.1754944e-38, %v627
    %v629 = vsel %vm626, %v628, %v624
    %v630 = vmul.f32 1.0, %v629
    %v631 = vxor.u32 %v591, 2147483648
    %v632 = vmul.f32 %v631, 1.442695
    %v633 = vpow.pop %v632
    %v634 = vadd.f32 %v633, 1.0
    %v635 = vrcp.pop %v634
    %v636 = vmul.f32 %v634, %v635
    %v637 = vsub.f32 1.0, %v636
    %v638 = vmul.f32 %v635, %v637
    %v639 = vadd.f32 %v635, %v638
    %vm640 = vweird.f32 %v634
    %vm641 = vweird.f32 %v635
    %vm642 = vmor %vm640, %vm641
    %v643 = vsel %vm642, %v635, %v639
    %v644 = vand.u32 2147483647, %v634
    %vm645 = vcmp.eq.f32.partialorder %v644, 8.507059e+37
    %v646 = vand.u32 %v634, 2147483648
    %v647 = vor.u32 1.1754944e-38, %v646
    %v648 = vsel %vm645, %v647, %v643
    %v649 = vmul.f32 1.0, %v648
    %v650 = vtanh.pop %v592
    %v651 = vld [vmem:[#allocation3] sm:$0xff]
    %v652 = vmul.f32 %v630, %v651
    %v653 = vmul.f32 %v611, %v650
    %v654 = vadd.f32 %v652, %v653
    %v655 = vtanh.pop %v654
    %v656 = vmul.f32 %v649, %v655
    %657 = vst [vmem:[#allocation3] sm:$0xff] %v654
    %658 = vst [vmem:[#allocation2] sm:$0xff] %v656
    %v659 = vpack.c.bf16 %v656, %v656
    %v660 = vld [vmem:[#allocation8] sm:$0xf]
    %v661 = vld [vmem:[#allocation8 + $0x4] sm:$0xf]
    %v662 = vld [vmem:[#allocation8 + $0x8] sm:$0xf]
    %v663 = vld [vmem:[#allocation8 + $0xc] sm:$0xf]
    %v664 = vld [vmem:[#allocation8 + $0x10] sm:$0xf]
    %v665 = vld [vmem:[#allocation8 + $0x14] sm:$0xf]
    %v666 = vld [vmem:[#allocation8 + $0x18] sm:$0xf]
    %v667 = vld [vmem:[#allocation8 + $0x1c] sm:$0xf]
    %v668 = vld [vmem:[#allocation8 + $0x20] sm:$0xf]
    %v669 = vld [vmem:[#allocation8 + $0x24] sm:$0xf]
    %v670 = vld [vmem:[#allocation8 + $0x28] sm:$0xf]
    %v671 = vld [vmem:[#allocation8 + $0x2c] sm:$0xf]
    %v672 = vld [vmem:[#allocation8 + $0x30] sm:$0xf]
    %v673 = vld [vmem:[#allocation8 + $0x34] sm:$0xf]
    %v674 = vld [vmem:[#allocation8 + $0x38] sm:$0xf]
    %v675 = vld [vmem:[#allocation8 + $0x3c] sm:$0xf]
    %v676 = vld [vmem:[%s7] sm:$0x1]
    %v678 = vperm.slane %v676, 0
    %v696 = vunpack.c.l.b16 %v660
    %v697 = vunpack.c.l.b16 %v661
    %v698 = vunpack.c.l.b16 %v662
    %v699 = vunpack.c.l.b16 %v663
    %v700 = vunpack.c.l.b16 %v664
    %v701 = vunpack.c.l.b16 %v665
    %v702 = vunpack.c.l.b16 %v666
    %v703 = vunpack.c.l.b16 %v667
    %v704 = vunpack.c.l.b16 %v668
    %v705 = vunpack.c.l.b16 %v669
    %v706 = vunpack.c.l.b16 %v670
    %v707 = vunpack.c.l.b16 %v671
    %v708 = vunpack.c.l.b16 %v672
    %v709 = vunpack.c.l.b16 %v673
    %v710 = vunpack.c.l.b16 %v674
    %v711 = vunpack.c.l.b16 %v675
    %v712 = vpack.c.b16 %v697, %v696
    %v713 = vpack.c.b16 %v699, %v698
    %v714 = vpack.c.b16 %v701, %v700
    %v715 = vpack.c.b16 %v703, %v702
    %v716 = vpack.c.b16 %v705, %v704
    %v717 = vpack.c.b16 %v707, %v706
    %v718 = vpack.c.b16 %v709, %v708
    %v719 = vpack.c.b16 %v711, %v710
    %728 = vmatpush.bf16.msra.mxu0 %v719
    %729 = vmatpush.bf16.msra.mxu0 %v718
    %730 = vmatpush.bf16.msra.mxu0 %v717
    %731 = vmatpush.bf16.msra.mxu0 %v716
    %732 = vmatpush.bf16.msra.mxu0 %v715
    %733 = vmatpush.bf16.msra.mxu0 %v714
    %734 = vmatpush.bf16.msra.mxu0 %v713
    %735 = vmatpush.bf16.msra.mxu0 %v712
    %736 = vmatmul.bf16.gmra.mxu0 %v659
    %v737 = vpop.f32.mrf.mxu0
    %v738 = vadd.f32 %v678, %v737
    %v739 = vpop.f32.mrf.mxu0
    %740 = vdwg.mxu0
    %741 = vmax.xlane.f32.xlu0 %v738
    %v742 = vpop.xlane.xlu0 %741
    %v743 = vsub.f32 %v738, %v742
    %v744 = vmul.f32 %v743, 1.442695
    %v745 = vpow.pop %v744
    %746 = vadd.xlane.f32.xlu0 %v745
    %v747 = vpop.xlane.xlu0 %746
    %v748 = vlog2.pop %v747
    %v749 = vmul.f32 %v748, 0.6931472
    %v750 = vadd.f32 %v749, %v742
    %v751 = vsub.f32 %v738, %v750
    %752 = vst [vmem:[%s8] sm:$0xff] %v751
    // Predicated region
    $region50: #{forward.1} parent=1 // pred_check
      %p753 = pneg %p79
    $region51: #{forward.1} parent=1 // pred_check_branch
      %755 = sbr.rel (%p753) target = $region53
    $region52: #{forward.1} parent=1 // pred_region
      %756 = vst [vmem:[%s9] sm:$0xff] %v656
      %757 = vst [vmem:[%s10] sm:$0xff] %v654
    $region53: #{forward.1} parent=1 // pred_fallthru
      _
    // Predicated region
    $region54: #{forward.1} parent=1 // pred_check
      _
    $region55: #{forward.1} parent=1 // pred_check_branch
      %759 = sbr.rel (0) target = $region57
    $region56: #{forward.1} parent=1 // pred_region
      _
    $region57: #{forward.1} parent=1 // pred_fallthru
      _
    // Predicated region
    $region58: #{forward.1} parent=1 // pred_check
      _
    $region59: #{forward.1} parent=1 // pred_check_branch
      %761 = sbr.rel (0) target = $region61
    $region60: #{forward.1} parent=1 // pred_region
      _
    $region61: #{forward.1} parent=1 // pred_fallthru
      _
    // Predicated region
    $region62: #{forward.1} parent=1 // pred_check
      _
    $region63: #{forward.1} parent=1 // pred_check_branch
      %763 = sbr.rel (0) target = $region65
    $region64: #{forward.1} parent=1 // pred_region
      _
    $region65: #{forward.1} parent=1 // pred_fallthru
      _
    // Predicated region
    $region66: #{forward.1} parent=1 // pred_check
      _
    $region67: #{forward.1} parent=1 // pred_check_branch
      %765 = sbr.rel (0) target = $region69
    $region68: #{forward.1} parent=1 // pred_region
      _
    $region69: #{forward.1} parent=1 // pred_fallthru
      _
    // Predicated region
    $region70: #{forward.1} parent=1 // pred_check
      _
    $region71: #{forward.1} parent=1 // pred_check_branch
      %767 = sbr.rel (0) target = $region73
    $region72: #{forward.1} parent=1 // pred_region
      _
    $region73: #{forward.1} parent=1 // pred_fallthru
      _
    // Predicated region
    $region74: #{forward.1} parent=1 // pred_check
      _
    $region75: #{forward.1} parent=1 // pred_check_branch
      %769 = sbr.rel (0) target = $region77
    $region76: #{forward.1} parent=1 // pred_region
      _
    $region77: #{forward.1} parent=1 // pred_fallthru
      _
    %770 = vsyncpa [#allocation5], 1
    %771 = vsyncpa [#allocation7], 1

</llo_original>
